<compile_context>
chip_gen: v7x
topology: tpu7x:2x2x1
jax: 0.10.0
libtpu: 0.0.40
codegen_flags: <defaults>
</compile_context>

<pallas_src>
import functools

import jax
import jax.numpy as jnp
from jax.experimental import pallas as pl
from jax.experimental.pallas import tpu as pltpu


def _round_up(x, m):
    return (x + m - 1) // m * m


def _vme_kernel(x_ref, w1_ref, b1_ref, w2_ref, b2_ref, wh_ref, bh_ref,
                eps_ref, z_ref, mean_ref, logvar_ref, *, latent_dim):
    """One row-tile: encoder MLP, fused heads, reparameterization trick."""
    x = x_ref[...]                      # (tile_n, 3)   float32
    w1 = w1_ref[...]                    # (3, 64)       float32

    # Linear(3, 64) as 3 VPU broadcast-FMAs (avoids a K=3 MXU pass), then ReLU.
    h = (x[:, 0:1] * w1[0:1, :]
         + x[:, 1:2] * w1[1:2, :]
         + x[:, 2:3] * w1[2:3, :]
         + b1_ref[...])
    h = jnp.maximum(h, 0.0)

    # Linear(64, 128) + ReLU on the MXU (operands may be bf16, f32 accumulate).
    h = jnp.dot(h.astype(w2_ref.dtype), w2_ref[...],
                preferred_element_type=jnp.float32) + b2_ref[...]
    h = jnp.maximum(h, 0.0)

    # Fused heads: one (128, 2*latent) matmul instead of two (128, latent).
    heads = jnp.dot(h.astype(wh_ref.dtype), wh_ref[...],
                    preferred_element_type=jnp.float32) + bh_ref[...]
    mean = heads[:, :latent_dim]
    logvar = heads[:, latent_dim:]

    # Reparameterization: z = mean + eps * exp(0.5 * logvar)
    std = jnp.exp(0.5 * logvar)
    z = mean + eps_ref[...] * std

    # Three direct lane-dense stores (no concatenate, no wrapper re-slicing).
    z_ref[...] = z.astype(z_ref.dtype)
    mean_ref[...] = mean.astype(mean_ref.dtype)
    logvar_ref[...] = logvar.astype(logvar_ref.dtype)


def variational_motion_encoder(x, params, eps, *, tile_n=2048,
                               mxu_bf16=False, out_dtype=jnp.float32):
    """x: (..., 3) f32, eps: (..., latent) f32 -> (z, mean, logvar)."""
    orig_shape = x.shape
    feat = orig_shape[-1]
    n = 1
    for d in orig_shape[:-1]:
        n *= d

    w1, b1, w2, b2, wm, bm, wv, bv = params
    latent_dim = wm.shape[1]

    # Fuse the two head projections into one lane-dense matmul.
    w_heads = jnp.concatenate([wm, wv], axis=1)     # (128, 2*latent)
    b_heads = jnp.concatenate([bm, bv], axis=1)     # (1,   2*latent)
    if mxu_bf16:
        # bf16 MXU operands, f32 accumulate (biases stay f32, added post-dot).
        w2 = w2.astype(jnp.bfloat16)
        w_heads = w_heads.astype(jnp.bfloat16)

    x2d = x.reshape(n, feat)
    eps2d = eps.reshape(n, latent_dim)

    # Row tiling: tile must be sublane (8) aligned. No jnp.pad of the inputs --
    # the ragged last block is handled by Pallas; the outputs are exactly n rows.
    tile_n = max(8, _round_up(min(int(tile_n), max(n, 1)), 8))
    # Keep grid >= 2 when possible so the "parallel" row axis feeds both v7x TCs.
    if n > 8 and tile_n >= _round_up(n, 8):
        tile_n = max(8, _round_up(pl.cdiv(n, 2), 8))
    grid = (pl.cdiv(n, tile_n),)

    const_map = lambda i: (0, 0)        # weights / biases resident in VMEM
    row_map = lambda i: (i, 0)
    in_specs = [
        pl.BlockSpec((tile_n, feat), row_map),                 # x tile (lane-padded in VMEM)
        pl.BlockSpec(w1.shape, const_map),
        pl.BlockSpec(b1.shape, const_map),
        pl.BlockSpec(w2.shape, const_map),
        pl.BlockSpec(b2.shape, const_map),
        pl.BlockSpec(w_heads.shape, const_map),
        pl.BlockSpec(b_heads.shape, const_map),
        pl.BlockSpec((tile_n, latent_dim), row_map),           # eps tile
    ]
    out_specs = (
        pl.BlockSpec((tile_n, latent_dim), row_map),           # z
        pl.BlockSpec((tile_n, latent_dim), row_map),           # mean
        pl.BlockSpec((tile_n, latent_dim), row_map),           # logvar
    )
    out_shape = (
        jax.ShapeDtypeStruct((n, latent_dim), out_dtype),
        jax.ShapeDtypeStruct((n, latent_dim), out_dtype),
        jax.ShapeDtypeStruct((n, latent_dim), out_dtype),
    )

    out_bytes = jnp.dtype(out_dtype).itemsize
    flops = 2 * n * (3 * 64 + 64 * 128 + 128 * 2 * latent_dim)
    param_bytes = sum(int(p.size) * p.dtype.itemsize
                      for p in (w1, b1, w2, b2, w_heads, b_heads))
    bytes_accessed = (n * (feat + latent_dim) * 4
                      + n * 3 * latent_dim * out_bytes
                      + param_bytes)

    z2d, mean2d, logvar2d = pl.pallas_call(
        functools.partial(_vme_kernel, latent_dim=latent_dim),
        out_shape=out_shape,
        grid=grid,
        in_specs=in_specs,
        out_specs=out_specs,
        compiler_params=pltpu.CompilerParams(
            dimension_semantics=("parallel",),
            vmem_limit_bytes=48 << 20),
        cost_estimate=pl.CostEstimate(
            flops=flops,
            transcendentals=n * latent_dim,
            bytes_accessed=bytes_accessed),
    )(x2d, w1, b1, w2, b2, w_heads, b_heads, eps2d)

    out_shape_nd = orig_shape[:-1] + (latent_dim,)
    return (z2d.reshape(out_shape_nd),
            mean2d.reshape(out_shape_nd),
            logvar2d.reshape(out_shape_nd))


def init_params(key, latent_dim=128):
    """Init mimicking PyTorch Linear defaults (U(-1/sqrt(fan_in), 1/sqrt(fan_in)))."""
    def linear(k, fan_in, fan_out):
        kw, kb = jax.random.split(k)
        bound = 1.0 / jnp.sqrt(fan_in)
        w = jax.random.uniform(kw, (fan_in, fan_out), jnp.float32, -bound, bound)
        b = jax.random.uniform(kb, (1, fan_out), jnp.float32, -bound, bound)
        return w, b

    k1, k2, k3, k4 = jax.random.split(key, 4)
    w1, b1 = linear(k1, 3, 64)
    w2, b2 = linear(k2, 64, 128)
    wm, bm = linear(k3, 128, latent_dim)
    wv, bv = linear(k4, 128, latent_dim)
    return (w1, b1, w2, b2, wm, bm, wv, bv)


def _reference(x, params, eps):
    w1, b1, w2, b2, wm, bm, wv, bv = params
    h = jnp.maximum(x @ w1 + b1, 0.0)
    h = jnp.maximum(h @ w2 + b2, 0.0)
    mean = h @ wm + bm
    logvar = h @ wv + bv
    std = jnp.exp(0.5 * logvar)
    z = mean + eps * std
    return z, mean, logvar


if __name__ == "__main__":
    key = jax.random.PRNGKey(0)
    k_x, k_p, k_eps = jax.random.split(key, 3)

    batch, seq, latent_dim = 2, 8, 128
    x = jax.random.normal(k_x, (batch, seq, 3), jnp.float32)
    params = init_params(k_p, latent_dim=latent_dim)
    # eps ~ randn_like(std); generated deterministically outside the kernel
    eps = jax.random.normal(k_eps, (batch, seq, latent_dim), jnp.float32)

    x2d = x.reshape(-1, 3)
    eps2d = eps.reshape(-1, latent_dim)
    z_ref, mean_ref, logvar_ref = _reference(x2d, params, eps2d)

    # 1) f32 path: exact reference semantics.
    z, mean, logvar = variational_motion_encoder(x, params, eps)
    jax.block_until_ready((z, mean, logvar))
    assert jnp.allclose(z.reshape(-1, latent_dim), z_ref, atol=1e-4), "z mismatch"
    assert jnp.allclose(mean.reshape(-1, latent_dim), mean_ref, atol=1e-4), "mean mismatch"
    assert jnp.allclose(logvar.reshape(-1, latent_dim), logvar_ref, atol=1e-4), "logvar mismatch"

    # 2) fast path: bf16 MXU operands + bf16 writeback (mem-bound win); relaxed tol.
    zb, mb, vb = variational_motion_encoder(x, params, eps,
                                            mxu_bf16=True, out_dtype=jnp.bfloat16)
    jax.block_until_ready((zb, mb, vb))
    assert jnp.allclose(zb.astype(jnp.float32).reshape(-1, latent_dim), z_ref,
                        atol=5e-2, rtol=5e-2), "z (bf16) mismatch"
    assert jnp.allclose(mb.astype(jnp.float32).reshape(-1, latent_dim), mean_ref,
                        atol=5e-2, rtol=5e-2), "mean (bf16) mismatch"
    assert jnp.allclose(vb.astype(jnp.float32).reshape(-1, latent_dim), logvar_ref,
                        atol=5e-2, rtol=5e-2), "logvar (bf16) mismatch"

    print("KERNEL_OK")
</pallas_src>

<mosaic_0001>
module attributes {stable_mosaic.version = 11 : i64} {
  func.func @_vme_kernel(%arg0: i32, %arg1: memref<8x3xf32, #tpu.memory_space<vmem>>, %arg2: memref<3x64xf32, #tpu.memory_space<vmem>>, %arg3: memref<1x64xf32, #tpu.memory_space<vmem>>, %arg4: memref<64x128xf32, #tpu.memory_space<vmem>>, %arg5: memref<1x128xf32, #tpu.memory_space<vmem>>, %arg6: memref<128x256xf32, #tpu.memory_space<vmem>>, %arg7: memref<1x256xf32, #tpu.memory_space<vmem>>, %arg8: memref<8x128xf32, #tpu.memory_space<vmem>>, %arg9: memref<8x128xf32, #tpu.memory_space<vmem>>, %arg10: memref<8x128xf32, #tpu.memory_space<vmem>>, %arg11: memref<8x128xf32, #tpu.memory_space<vmem>>) attributes {dimension_semantics = [#tpu.dimension_semantics<parallel>], iteration_bounds = array<i64: 2>, scalar_prefetch = 0 : i64, scratch_operands = 0 : i64, tpu.core_type = #tpu.core_type<tc>, window_params = [{transform_indices = @transform_0, window_bounds = array<i64: 8, 3>}, {pipeline_mode = #tpu.pipeline_mode<synchronous>, transform_indices = @transform_1, window_bounds = array<i64: 3, 64>}, {pipeline_mode = #tpu.pipeline_mode<synchronous>, transform_indices = @transform_2, window_bounds = array<i64: 1, 64>}, {pipeline_mode = #tpu.pipeline_mode<synchronous>, transform_indices = @transform_3, window_bounds = array<i64: 64, 128>}, {pipeline_mode = #tpu.pipeline_mode<synchronous>, transform_indices = @transform_4, window_bounds = array<i64: 1, 128>}, {pipeline_mode = #tpu.pipeline_mode<synchronous>, transform_indices = @transform_5, window_bounds = array<i64: 128, 256>}, {pipeline_mode = #tpu.pipeline_mode<synchronous>, transform_indices = @transform_6, window_bounds = array<i64: 1, 256>}, {transform_indices = @transform_7, window_bounds = array<i64: 8, 128>}, {transform_indices = @transform_8, window_bounds = array<i64: 8, 128>}, {transform_indices = @transform_9, window_bounds = array<i64: 8, 128>}, {transform_indices = @transform_10, window_bounds = array<i64: 8, 128>}]} {
    %c0 = arith.constant 0 : index
    %c0_0 = arith.constant 0 : index
    %0 = vector.load %arg1[%c0, %c0_0] : memref<8x3xf32, #tpu.memory_space<vmem>>, vector<8x3xf32>
    %c0_1 = arith.constant 0 : index
    %c0_2 = arith.constant 0 : index
    %1 = vector.load %arg2[%c0_1, %c0_2] : memref<3x64xf32, #tpu.memory_space<vmem>>, vector<3x64xf32>
    %2 = vector.extract_strided_slice %0 {offsets = [0, 0], sizes = [8, 1], strides = [1, 1]} : vector<8x3xf32> to vector<8x1xf32>
    %3 = vector.extract_strided_slice %1 {offsets = [0, 0], sizes = [1, 64], strides = [1, 1]} : vector<3x64xf32> to vector<1x64xf32>
    %4 = vector.broadcast %2 : vector<8x1xf32> to vector<8x64xf32>
    %5 = vector.broadcast %3 : vector<1x64xf32> to vector<8x64xf32>
    %6 = arith.mulf %4, %5 : vector<8x64xf32>
    %7 = vector.extract_strided_slice %0 {offsets = [0, 1], sizes = [8, 1], strides = [1, 1]} : vector<8x3xf32> to vector<8x1xf32>
    %8 = vector.extract_strided_slice %1 {offsets = [1, 0], sizes = [1, 64], strides = [1, 1]} : vector<3x64xf32> to vector<1x64xf32>
    %9 = vector.broadcast %7 : vector<8x1xf32> to vector<8x64xf32>
    %10 = vector.broadcast %8 : vector<1x64xf32> to vector<8x64xf32>
    %11 = arith.mulf %9, %10 : vector<8x64xf32>
    %12 = arith.addf %6, %11 : vector<8x64xf32>
    %13 = vector.extract_strided_slice %0 {offsets = [0, 2], sizes = [8, 1], strides = [1, 1]} : vector<8x3xf32> to vector<8x1xf32>
    %14 = vector.extract_strided_slice %1 {offsets = [2, 0], sizes = [1, 64], strides = [1, 1]} : vector<3x64xf32> to vector<1x64xf32>
    %15 = vector.broadcast %13 : vector<8x1xf32> to vector<8x64xf32>
    %16 = vector.broadcast %14 : vector<1x64xf32> to vector<8x64xf32>
    %17 = arith.mulf %15, %16 : vector<8x64xf32>
    %18 = arith.addf %12, %17 : vector<8x64xf32>
    %c0_3 = arith.constant 0 : index
    %c0_4 = arith.constant 0 : index
    %19 = vector.load %arg3[%c0_3, %c0_4] : memref<1x64xf32, #tpu.memory_space<vmem>>, vector<1x64xf32>
    %20 = vector.broadcast %19 : vector<1x64xf32> to vector<8x64xf32>
    %21 = arith.addf %18, %20 : vector<8x64xf32>
    %cst = arith.constant 0.000000e+00 : f32
    %22 = vector.broadcast %cst : f32 to vector<8x64xf32>
    %23 = arith.maximumf %21, %22 : vector<8x64xf32>
    %c0_5 = arith.constant 0 : index
    %c0_6 = arith.constant 0 : index
    %24 = vector.load %arg4[%c0_5, %c0_6] : memref<64x128xf32, #tpu.memory_space<vmem>>, vector<64x128xf32>
    %cst_7 = arith.constant dense<0.000000e+00> : vector<8x128xf32>
    %25 = tpu.matmul %23, %24, %cst_7 {dimension_numbers = #tpu.dot_dimension_numbers<[1], [0], [0], [1], [0, 0, 1, 1], [], []>} : vector<8x64xf32>, vector<64x128xf32>, vector<8x128xf32> -> vector<8x128xf32>
    %c0_8 = arith.constant 0 : index
    %c0_9 = arith.constant 0 : index
    %26 = vector.load %arg5[%c0_8, %c0_9] : memref<1x128xf32, #tpu.memory_space<vmem>>, vector<1x128xf32>
    %27 = vector.broadcast %26 : vector<1x128xf32> to vector<8x128xf32>
    %28 = arith.addf %25, %27 : vector<8x128xf32>
    %cst_10 = arith.constant 0.000000e+00 : f32
    %29 = vector.broadcast %cst_10 : f32 to vector<8x128xf32>
    %30 = arith.maximumf %28, %29 : vector<8x128xf32>
    %c0_11 = arith.constant 0 : index
    %c0_12 = arith.constant 0 : index
    %31 = vector.load %arg6[%c0_11, %c0_12] : memref<128x256xf32, #tpu.memory_space<vmem>>, vector<128x256xf32>
    %cst_13 = arith.constant dense<0.000000e+00> : vector<8x256xf32>
    %32 = tpu.matmul %30, %31, %cst_13 {dimension_numbers = #tpu.dot_dimension_numbers<[1], [0], [0], [1], [0, 0, 1, 1], [], []>} : vector<8x128xf32>, vector<128x256xf32>, vector<8x256xf32> -> vector<8x256xf32>
    %c0_14 = arith.constant 0 : index
    %c0_15 = arith.constant 0 : index
    %33 = vector.load %arg7[%c0_14, %c0_15] : memref<1x256xf32, #tpu.memory_space<vmem>>, vector<1x256xf32>
    %34 = vector.broadcast %33 : vector<1x256xf32> to vector<8x256xf32>
    %35 = arith.addf %32, %34 : vector<8x256xf32>
    %36 = vector.extract_strided_slice %35 {offsets = [0, 0], sizes = [8, 128], strides = [1, 1]} : vector<8x256xf32> to vector<8x128xf32>
    %37 = vector.extract_strided_slice %35 {offsets = [0, 128], sizes = [8, 128], strides = [1, 1]} : vector<8x256xf32> to vector<8x128xf32>
    %cst_16 = arith.constant 5.000000e-01 : f32
    %38 = vector.broadcast %cst_16 : f32 to vector<8x128xf32>
    %39 = arith.mulf %38, %37 : vector<8x128xf32>
    %40 = math.exp %39 : vector<8x128xf32>
    %c0_17 = arith.constant 0 : index
    %c0_18 = arith.constant 0 : index
    %41 = vector.load %arg8[%c0_17, %c0_18] : memref<8x128xf32, #tpu.memory_space<vmem>>, vector<8x128xf32>
    %42 = arith.mulf %41, %40 : vector<8x128xf32>
    %43 = arith.addf %36, %42 : vector<8x128xf32>
    %c0_19 = arith.constant 0 : index
    %c0_20 = arith.constant 0 : index
    %44 = vector.load %arg9[%c0_19, %c0_20] : memref<8x128xf32, #tpu.memory_space<vmem>>, vector<8x128xf32>
    tpu.vector_store %arg9[%c0_19, %c0_20], %43 {strides = array<i32>} : memref<8x128xf32, #tpu.memory_space<vmem>>, vector<8x128xf32>,
    %c0_21 = arith.constant 0 : index
    %c0_22 = arith.constant 0 : index
    %45 = vector.load %arg10[%c0_21, %c0_22] : memref<8x128xf32, #tpu.memory_space<vmem>>, vector<8x128xf32>
    tpu.vector_store %arg10[%c0_21, %c0_22], %36 {strides = array<i32>} : memref<8x128xf32, #tpu.memory_space<vmem>>, vector<8x128xf32>,
    %c0_23 = arith.constant 0 : index
    %c0_24 = arith.constant 0 : index
    %46 = vector.load %arg11[%c0_23, %c0_24] : memref<8x128xf32, #tpu.memory_space<vmem>>, vector<8x128xf32>
    tpu.vector_store %arg11[%c0_23, %c0_24], %37 {strides = array<i32>} : memref<8x128xf32, #tpu.memory_space<vmem>>, vector<8x128xf32>,
    return
  }
  func.func @transform_0(%arg0: i32) -> (i32, i32) {
    %c0_i32 = arith.constant 0 : i32
    %c0_i32_0 = arith.constant 0 : i32
    return %arg0, %c0_i32 : i32, i32
  }
  func.func @transform_1(%arg0: i32) -> (i32, i32) {
    %c0_i32 = arith.constant 0 : i32
    %c0_i32_0 = arith.constant 0 : i32
    %c0_i32_1 = arith.constant 0 : i32
    return %c0_i32, %c0_i32_0 : i32, i32
  }
  func.func @transform_2(%arg0: i32) -> (i32, i32) {
    %c0_i32 = arith.constant 0 : i32
    %c0_i32_0 = arith.constant 0 : i32
    %c0_i32_1 = arith.constant 0 : i32
    return %c0_i32, %c0_i32_0 : i32, i32
  }
  func.func @transform_3(%arg0: i32) -> (i32, i32) {
    %c0_i32 = arith.constant 0 : i32
    %c0_i32_0 = arith.constant 0 : i32
    %c0_i32_1 = arith.constant 0 : i32
    return %c0_i32, %c0_i32_0 : i32, i32
  }
  func.func @transform_4(%arg0: i32) -> (i32, i32) {
    %c0_i32 = arith.constant 0 : i32
    %c0_i32_0 = arith.constant 0 : i32
    %c0_i32_1 = arith.constant 0 : i32
    return %c0_i32, %c0_i32_0 : i32, i32
  }
  func.func @transform_5(%arg0: i32) -> (i32, i32) {
    %c0_i32 = arith.constant 0 : i32
    %c0_i32_0 = arith.constant 0 : i32
    %c0_i32_1 = arith.constant 0 : i32
    return %c0_i32, %c0_i32_0 : i32, i32
  }
  func.func @transform_6(%arg0: i32) -> (i32, i32) {
    %c0_i32 = arith.constant 0 : i32
    %c0_i32_0 = arith.constant 0 : i32
    %c0_i32_1 = arith.constant 0 : i32
    return %c0_i32, %c0_i32_0 : i32, i32
  }
  func.func @transform_7(%arg0: i32) -> (i32, i32) {
    %c0_i32 = arith.constant 0 : i32
    %c0_i32_0 = arith.constant 0 : i32
    return %arg0, %c0_i32 : i32, i32
  }
  func.func @transform_8(%arg0: i32) -> (i32, i32) {
    %c0_i32 = arith.constant 0 : i32
    %c0_i32_0 = arith.constant 0 : i32
    return %arg0, %c0_i32 : i32, i32
  }
  func.func @transform_9(%arg0: i32) -> (i32, i32) {
    %c0_i32 = arith.constant 0 : i32
    %c0_i32_0 = arith.constant 0 : i32
    return %arg0, %c0_i32 : i32, i32
  }
  func.func @transform_10(%arg0: i32) -> (i32, i32) {
    %c0_i32 = arith.constant 0 : i32
    %c0_i32_0 = arith.constant 0 : i32
    return %arg0, %c0_i32 : i32, i32
  }
}

</mosaic_0001>

<llo_original>
// kernel: tpu_custom_call.1
$region0: #{tpu_custom_call.1}
  #allocation0 [shape = 'u32[]', space=smem, size = 0x4, offset = 0x4, fixed_abs, tag = 'smem constant byte address 0x4 - core index']
  #allocation1 [shape = 'u32[144,128]{1,0:T(1,128)}', space=vmem, size = 0x12000, scoped, tag = 'internal scratch']
  %s0 = inlined_call_operand.vmem [shape: f32[16,3], index: 0, kind: input, shape index: {}]
  %s1 = inlined_call_operand.vmem [shape: f32[3,64], index: 1, kind: input, shape index: {}]
  %s2 = inlined_call_operand.vmem [shape: f32[1,64], index: 2, kind: input, shape index: {}]
  %s3 = inlined_call_operand.hbm [shape: f32[64,128], index: 3, kind: input, shape index: {}]
  %s4 = inlined_call_operand.vmem [shape: f32[1,128], index: 4, kind: input, shape index: {}]
  %s5 = inlined_call_operand.hbm [shape: f32[128,256], index: 5, kind: input, shape index: {}]
  %s6 = inlined_call_operand.vmem [shape: f32[1,256], index: 6, kind: input, shape index: {}]
  %s7 = inlined_call_operand.vmem [shape: f32[16,128], index: 7, kind: input, shape index: {}]
  %s8 = inlined_call_operand.hbm [shape: f32[16,128], index: 8, kind: output, shape index: {0}]
  %s9 = inlined_call_operand.hbm [shape: f32[16,128], index: 9, kind: output, shape index: {1}]
  %s10 = inlined_call_operand.hbm [shape: f32[16,128], index: 10, kind: output, shape index: {2}]
  %11 = xla_tuple %s8, %s9, %s10
  %s12 = sld [smem:[#allocation0]]
  $region89: #{tpu_custom_call.1} parent=0
    _
  %s14 = ssub.s32 1, %s12
  %s15 = scalar_select 0, %s14, %s12
  $region1: #{tpu_custom_call.1} parent=0
    #allocation2 [shape = 'u8[32768]{0}', space=vmem, size = 0x8000, scoped, tag = 'input window, operand 3, single buffered']
    #allocation3 [shape = 's32[2]{0}', space=sflag, size = 0x8, scoped, tag = 'scoped memory for tpu_custom_call.1']
    #allocation4 [shape = 's32[2]{0}', space=sflag, size = 0x8, scoped, tag = 'scoped memory for tpu_custom_call.1']
    #allocation5 [shape = 'u8[131072]{0}', space=vmem, size = 0x20000, scoped, tag = 'input window, operand 5, single buffered']
    #allocation6 [shape = 's32[1]{0}', space=sflag, size = 0x4, scoped, tag = 'scoped memory for tpu_custom_call.1']
    #allocation7 [shape = 'u8[8192]{0}', space=vmem, size = 0x2000, scoped, tag = 'output window, operand 0']
    #allocation8 [shape = 'u8[8192]{0}', space=vmem, size = 0x2000, scoped, tag = 'output window, operand 1']
    #allocation9 [shape = 's32[2]{0}', space=sflag, size = 0x8, scoped, tag = 'scoped memory for tpu_custom_call.1']
    #allocation10 [shape = 'u8[8192]{0}', space=vmem, size = 0x2000, scoped, tag = 'output window, operand 2']
    %16 = vsyncpa [#allocation3], 0
    %17 = vsyncpa [#allocation6], 0
    %18 = vsyncpa [#allocation4], 0
    %s19 = scalar_lea.sflag [#allocation4], 1
    %20 = vsyncpa %s19, 0
    %21 = vsyncpa [#allocation9], 0
    %s22 = scalar_lea.sflag [#allocation9], 1
    %23 = vsyncpa %s22, 0
    loop: start=0, step=1, limit=4
    $region2: #{tpu_custom_call.1} parent=1 // loop_pre_header
      _
    $region3: #{tpu_custom_call.1} parent=1 // loop_header
      %s25 = sphi 0, %s29
      %p26 = scmp.ge.s32.totalorder %s25, 4
      %s35 = sphi 0, %s37
      %s38 = sphi 0, %s35
      %s39 = sphi 0, %s38
      %s55 = sphi 0, %s39
      %s59 = sphi 0, %s59
      %s61 = sphi 0, %s59
      %s62 = sphi 0, %s61
      %s76 = sphi 0, %s62
      %s80 = sphi 0, %s80
      %s82 = sphi 0, %s80
      %s83 = sphi 0, %s82
      %s97 = sphi 0, %s83
      %s101 = sphi 0, %s101
      %s103 = sphi 0, %s101
      %s104 = sphi 0, %s103
      %s118 = sphi 0, %s104
      %s122 = sphi 0, %s122
      %s124 = sphi 0, %s122
      %s125 = sphi 0, %s124
      %s139 = sphi 0, %s125
      %s143 = sphi 0, %s143
      %s145 = sphi 0, %s143
      %s146 = sphi 0, %s145
      %s160 = sphi 0, %s146
      %s164 = sphi 0, %s164
      %s166 = sphi 0, %s164
      %s167 = sphi 0, %s166
      %s181 = sphi 0, %s167
      %s187 = sphi 0, %s189
      %s190 = sphi 0, %s187
      %s191 = sphi 0, %s190
      %s207 = sphi 0, %s191
      %s213 = sphi 0, %s215
      %s216 = sphi 0, %s213
      %s217 = sphi 0, %s216
      %s233 = sphi 0, %s217
      %s239 = sphi 0, %s241
      %s242 = sphi 0, %s239
      %s243 = sphi 0, %s242
      %s259 = sphi 0, %s243
      %s265 = sphi 0, %s267
      %s268 = sphi 0, %s265
      %s269 = sphi 0, %s268
      %s285 = sphi 0, %s269
    $region4: #{tpu_custom_call.1} parent=1 // loop_header_branch
      %28 = sbr.rel (%p26) target = $region8
    $region5: #{tpu_custom_call.1} parent=1 // loop_body
      %s30 = ssub.s32 %s25, 1
      %s31 = ssub.s32 %s25, 2
      %s32 = sadd.s32 %s25, 1
      %s33 = ssub.s32 %s25, %s32
      %p34 = scmp.eq.s32.totalorder %s33, 0
      %s36 = sadd.s32 %s35, 1
      %s37 = scalar_select %p34, %s35, %s36
      %p40 = pneg %p34
      %p41 = scmp.eq.s32.totalorder %s25, 1
      %p42 = por %p40, %p41
      %p43 = scmp.ne.s32.totalorder %s35, %s38
      %p44 = scmp.eq.s32.totalorder %s25, 0
      %p45 = por %p43, %p44
      %p46 = scmp.ne.s32.totalorder %s35, %s38
      %p47 = scmp.eq.s32.totalorder %s30, 1
      %p48 = por %p46, %p47
      %p49 = scmp.ne.s32.totalorder %s38, %s39
      %p50 = scmp.eq.s32.totalorder %s30, 0
      %p51 = por %p49, %p50
      %p52 = scmp.ne.s32.totalorder %s38, %s39
      %p53 = scmp.eq.s32.totalorder %s31, 1
      %p54 = por %p52, %p53
      %p56 = scmp.ne.s32.totalorder %s39, %s55
      %p57 = scmp.eq.s32.totalorder %s31, 0
      %p58 = por %p56, %p57
      %s60 = sadd.s32 %s59, 1
      %p63 = scmp.eq.s32.totalorder %s25, 1
      %p64 = scmp.ne.s32.totalorder %s59, %s61
      %p65 = scmp.eq.s32.totalorder %s25, 0
      %p66 = por %p64, %p65
      %p67 = scmp.ne.s32.totalorder %s59, %s61
      %p68 = scmp.eq.s32.totalorder %s30, 1
      %p69 = por %p67, %p68
      %p70 = scmp.ne.s32.totalorder %s61, %s62
      %p71 = scmp.eq.s32.totalorder %s30, 0
      %p72 = por %p70, %p71
      %p73 = scmp.ne.s32.totalorder %s61, %s62
      %p74 = scmp.eq.s32.totalorder %s31, 1
      %p75 = por %p73, %p74
      %p77 = scmp.ne.s32.totalorder %s62, %s76
      %p78 = scmp.eq.s32.totalorder %s31, 0
      %p79 = por %p77, %p78
      %s81 = sadd.s32 %s80, 1
      %p84 = scmp.eq.s32.totalorder %s25, 1
      %p85 = scmp.ne.s32.totalorder %s80, %s82
      %p86 = scmp.eq.s32.totalorder %s25, 0
      %p87 = por %p85, %p86
      %p88 = scmp.ne.s32.totalorder %s80, %s82
      %p89 = scmp.eq.s32.totalorder %s30, 1
      %p90 = por %p88, %p89
      %p91 = scmp.ne.s32.totalorder %s82, %s83
      %p92 = scmp.eq.s32.totalorder %s30, 0
      %p93 = por %p91, %p92
      %p94 = scmp.ne.s32.totalorder %s82, %s83
      %p95 = scmp.eq.s32.totalorder %s31, 1
      %p96 = por %p94, %p95
      %p98 = scmp.ne.s32.totalorder %s83, %s97
      %p99 = scmp.eq.s32.totalorder %s31, 0
      %p100 = por %p98, %p99
      %s102 = sadd.s32 %s101, 1
      %p105 = scmp.eq.s32.totalorder %s25, 1
      %p106 = scmp.ne.s32.totalorder %s101, %s103
      %p107 = scmp.eq.s32.totalorder %s25, 0
      %p108 = por %p106, %p107
      %p109 = scmp.ne.s32.totalorder %s101, %s103
      %p110 = scmp.eq.s32.totalorder %s30, 1
      %p111 = por %p109, %p110
      %p112 = scmp.ne.s32.totalorder %s103, %s104
      %p113 = scmp.eq.s32.totalorder %s30, 0
      %p114 = por %p112, %p113
      %p115 = scmp.ne.s32.totalorder %s103, %s104
      %p116 = scmp.eq.s32.totalorder %s31, 1
      %p117 = por %p115, %p116
      %p119 = scmp.ne.s32.totalorder %s104, %s118
      %p120 = scmp.eq.s32.totalorder %s31, 0
      %p121 = por %p119, %p120
      %s123 = sadd.s32 %s122, 1
      %p126 = scmp.eq.s32.totalorder %s25, 1
      %p127 = scmp.ne.s32.totalorder %s122, %s124
      %p128 = scmp.eq.s32.totalorder %s25, 0
      %p129 = por %p127, %p128
      %p130 = scmp.ne.s32.totalorder %s122, %s124
      %p131 = scmp.eq.s32.totalorder %s30, 1
      %p132 = por %p130, %p131
      %p133 = scmp.ne.s32.totalorder %s124, %s125
      %p134 = scmp.eq.s32.totalorder %s30, 0
      %p135 = por %p133, %p134
      %p136 = scmp.ne.s32.totalorder %s124, %s125
      %p137 = scmp.eq.s32.totalorder %s31, 1
      %p138 = por %p136, %p137
      %p140 = scmp.ne.s32.totalorder %s125, %s139
      %p141 = scmp.eq.s32.totalorder %s31, 0
      %p142 = por %p140, %p141
      %s144 = sadd.s32 %s143, 1
      %p147 = scmp.eq.s32.totalorder %s25, 1
      %p148 = scmp.ne.s32.totalorder %s143, %s145
      %p149 = scmp.eq.s32.totalorder %s25, 0
      %p150 = por %p148, %p149
      %p151 = scmp.ne.s32.totalorder %s143, %s145
      %p152 = scmp.eq.s32.totalorder %s30, 1
      %p153 = por %p151, %p152
      %p154 = scmp.ne.s32.totalorder %s145, %s146
      %p155 = scmp.eq.s32.totalorder %s30, 0
      %p156 = por %p154, %p155
      %p157 = scmp.ne.s32.totalorder %s145, %s146
      %p158 = scmp.eq.s32.totalorder %s31, 1
      %p159 = por %p157, %p158
      %p161 = scmp.ne.s32.totalorder %s146, %s160
      %p162 = scmp.eq.s32.totalorder %s31, 0
      %p163 = por %p161, %p162
      %s165 = sadd.s32 %s164, 1
      %p168 = scmp.eq.s32.totalorder %s25, 1
      %p169 = scmp.ne.s32.totalorder %s164, %s166
      %p170 = scmp.eq.s32.totalorder %s25, 0
      %p171 = por %p169, %p170
      %p172 = scmp.ne.s32.totalorder %s164, %s166
      %p173 = scmp.eq.s32.totalorder %s30, 1
      %p174 = por %p172, %p173
      %p175 = scmp.ne.s32.totalorder %s166, %s167
      %p176 = scmp.eq.s32.totalorder %s30, 0
      %p177 = por %p175, %p176
      %p178 = scmp.ne.s32.totalorder %s166, %s167
      %p179 = scmp.eq.s32.totalorder %s31, 1
      %p180 = por %p178, %p179
      %p182 = scmp.ne.s32.totalorder %s167, %s181
      %p183 = scmp.eq.s32.totalorder %s31, 0
      %p184 = por %p182, %p183
      %s185 = ssub.s32 %s25, %s32
      %p186 = scmp.eq.s32.totalorder %s185, 0
      %s188 = sadd.s32 %s187, 1
      %s189 = scalar_select %p186, %s187, %s188
      %p192 = pneg %p186
      %p193 = scmp.eq.s32.totalorder %s25, 1
      %p194 = por %p192, %p193
      %p195 = scmp.ne.s32.totalorder %s187, %s190
      %p196 = scmp.eq.s32.totalorder %s25, 0
      %p197 = por %p195, %p196
      %p198 = scmp.ne.s32.totalorder %s187, %s190
      %p199 = scmp.eq.s32.totalorder %s30, 1
      %p200 = por %p198, %p199
      %p201 = scmp.ne.s32.totalorder %s190, %s191
      %p202 = scmp.eq.s32.totalorder %s30, 0
      %p203 = por %p201, %p202
      %p204 = scmp.ne.s32.totalorder %s190, %s191
      %p205 = scmp.eq.s32.totalorder %s31, 1
      %p206 = por %p204, %p205
      %p208 = scmp.ne.s32.totalorder %s191, %s207
      %p209 = scmp.eq.s32.totalorder %s31, 0
      %p210 = por %p208, %p209
      %s211 = ssub.s32 %s25, %s32
      %p212 = scmp.eq.s32.totalorder %s211, 0
      %s214 = sadd.s32 %s213, 1
      %s215 = scalar_select %p212, %s213, %s214
      %p218 = pneg %p212
      %p219 = scmp.eq.s32.totalorder %s25, 1
      %p220 = por %p218, %p219
      %p221 = scmp.ne.s32.totalorder %s213, %s216
      %p222 = scmp.eq.s32.totalorder %s25, 0
      %p223 = por %p221, %p222
      %p224 = scmp.ne.s32.totalorder %s213, %s216
      %p225 = scmp.eq.s32.totalorder %s30, 1
      %p226 = por %p224, %p225
      %p227 = scmp.ne.s32.totalorder %s216, %s217
      %p228 = scmp.eq.s32.totalorder %s30, 0
      %p229 = por %p227, %p228
      %p230 = scmp.ne.s32.totalorder %s216, %s217
      %p231 = scmp.eq.s32.totalorder %s31, 1
      %p232 = por %p230, %p231
      %p234 = scmp.ne.s32.totalorder %s217, %s233
      %p235 = scmp.eq.s32.totalorder %s31, 0
      %p236 = por %p234, %p235
      %s237 = ssub.s32 %s25, %s32
      %p238 = scmp.eq.s32.totalorder %s237, 0
      %s240 = sadd.s32 %s239, 1
      %s241 = scalar_select %p238, %s239, %s240
      %p244 = pneg %p238
      %p245 = scmp.eq.s32.totalorder %s25, 1
      %p246 = por %p244, %p245
      %p247 = scmp.ne.s32.totalorder %s239, %s242
      %p248 = scmp.eq.s32.totalorder %s25, 0
      %p249 = por %p247, %p248
      %p250 = scmp.ne.s32.totalorder %s239, %s242
      %p251 = scmp.eq.s32.totalorder %s30, 1
      %p252 = por %p250, %p251
      %p253 = scmp.ne.s32.totalorder %s242, %s243
      %p254 = scmp.eq.s32.totalorder %s30, 0
      %p255 = por %p253, %p254
      %p256 = scmp.ne.s32.totalorder %s242, %s243
      %p257 = scmp.eq.s32.totalorder %s31, 1
      %p258 = por %p256, %p257
      %p260 = scmp.ne.s32.totalorder %s243, %s259
      %p261 = scmp.eq.s32.totalorder %s31, 0
      %p262 = por %p260, %p261
      %s263 = ssub.s32 %s25, %s32
      %p264 = scmp.eq.s32.totalorder %s263, 0
      %s266 = sadd.s32 %s265, 1
      %s267 = scalar_select %p264, %s265, %s266
      %p270 = pneg %p264
      %p271 = scmp.eq.s32.totalorder %s25, 1
      %p272 = por %p270, %p271
      %p273 = scmp.ne.s32.totalorder %s265, %s268
      %p274 = scmp.eq.s32.totalorder %s25, 0
      %p275 = por %p273, %p274
      %p276 = scmp.ne.s32.totalorder %s265, %s268
      %p277 = scmp.eq.s32.totalorder %s30, 1
      %p278 = por %p276, %p277
      %p279 = scmp.ne.s32.totalorder %s268, %s269
      %p280 = scmp.eq.s32.totalorder %s30, 0
      %p281 = por %p279, %p280
      %p282 = scmp.ne.s32.totalorder %s268, %s269
      %p283 = scmp.eq.s32.totalorder %s31, 1
      %p284 = por %p282, %p283
      %p286 = scmp.ne.s32.totalorder %s269, %s285
      %p287 = scmp.eq.s32.totalorder %s31, 0
      %p288 = por %p286, %p287
      %p289 = scmp.le.s32.totalorder 1, %s25
      %p290 = scmp.lt.s32.totalorder %s25, 3
      %p291 = pnand %p289, %p290
      %p292 = pneg %p291
      // Predicated region
      $region9: #{tpu_custom_call.1} parent=5 // pred_check
        _
      $region10: #{tpu_custom_call.1} parent=5 // pred_check_branch
        %294 = sbr.rel (%p291) target = $region12
      $region11: #{tpu_custom_call.1} parent=5 // pred_region
        %s295 = ssub.s32 %s25, 1
        // Predicated region
        $region13: #{tpu_custom_call.1} parent=11 // pred_check
          %p296 = pneg %p72
        $region14: #{tpu_custom_call.1} parent=11 // pred_check_branch
          %298 = sbr.rel (%p296) target = $region16
        $region15: #{tpu_custom_call.1} parent=11 // pred_region
          _
        $region16: #{tpu_custom_call.1} parent=11 // pred_fallthru
          _
        // Predicated region
        $region17: #{tpu_custom_call.1} parent=11 // pred_check
          %p299 = pneg %p93
        $region18: #{tpu_custom_call.1} parent=11 // pred_check_branch
          %301 = sbr.rel (%p299) target = $region20
        $region19: #{tpu_custom_call.1} parent=11 // pred_region
          _
        $region20: #{tpu_custom_call.1} parent=11 // pred_fallthru
          _
        // Predicated region
        $region21: #{tpu_custom_call.1} parent=11 // pred_check
          %p302 = pneg %p114
        $region22: #{tpu_custom_call.1} parent=11 // pred_check_branch
          %304 = sbr.rel (%p302) target = $region24
        $region23: #{tpu_custom_call.1} parent=11 // pred_region
          %s306 = ssub.s32 1024, 1024
          %307 = vsyncadd [#allocation3], %s306
          %s308 = sshll.u32 [#allocation2], 4
          %s309 = int_to_ptr.vmem [resolvable:$true] %s308
          %314 = dma.hbm_to_vmem [thread:$0]  %s3, 1024, %s309, [#allocation3], 128, 128, 8
        $region24: #{tpu_custom_call.1} parent=11 // pred_fallthru
          _
        // Predicated region
        $region25: #{tpu_custom_call.1} parent=11 // pred_check
          %p315 = pneg %p135
        $region26: #{tpu_custom_call.1} parent=11 // pred_check_branch
          %317 = sbr.rel (%p315) target = $region28
        $region27: #{tpu_custom_call.1} parent=11 // pred_region
          _
        $region28: #{tpu_custom_call.1} parent=11 // pred_fallthru
          _
        // Predicated region
        $region29: #{tpu_custom_call.1} parent=11 // pred_check
          %p318 = pneg %p156
        $region30: #{tpu_custom_call.1} parent=11 // pred_check_branch
          %320 = sbr.rel (%p318) target = $region32
        $region31: #{tpu_custom_call.1} parent=11 // pred_region
          %s322 = ssub.s32 4096, 4096
          %323 = vsyncadd [#allocation6], %s322
          %s324 = sshll.u32 [#allocation5], 4
          %s325 = int_to_ptr.vmem [resolvable:$true] %s324
          %330 = dma.hbm_to_vmem [thread:$0]  %s5, 4096, %s325, [#allocation6], 256, 256, 16
        $region32: #{tpu_custom_call.1} parent=11 // pred_fallthru
          _
        // Predicated region
        $region33: #{tpu_custom_call.1} parent=11 // pred_check
          %p331 = pneg %p177
        $region34: #{tpu_custom_call.1} parent=11 // pred_check_branch
          %333 = sbr.rel (%p331) target = $region36
        $region35: #{tpu_custom_call.1} parent=11 // pred_region
          _
        $region36: #{tpu_custom_call.1} parent=11 // pred_fallthru
          _
      $region12: #{tpu_custom_call.1} parent=5 // pred_fallthru
        _
      %p334 = scmp.lt.s32.totalorder %s25, 2
      // Predicated region
      $region37: #{tpu_custom_call.1} parent=5 // pred_check
        %p335 = pneg %p334
      $region38: #{tpu_custom_call.1} parent=5 // pred_check_branch
        %337 = sbr.rel (%p335) target = $region40
      $region39: #{tpu_custom_call.1} parent=5 // pred_region
        // Predicated region
        $region41: #{tpu_custom_call.1} parent=39 // pred_check
          %p338 = pneg %p45
        $region42: #{tpu_custom_call.1} parent=39 // pred_check_branch
          %340 = sbr.rel (%p338) target = $region44
        $region43: #{tpu_custom_call.1} parent=39 // pred_region
          %p341 = scmp.lt.s32.totalorder %s25, 1
          %s342 = scalar_select %p341, %s25, 1
          %s343 = smul.addr %s342, 8
          %s344 = scalar_lea.vmem %s0, %s343
        $region44: #{tpu_custom_call.1} parent=39 // pred_fallthru
          _
        // Predicated region
        $region45: #{tpu_custom_call.1} parent=39 // pred_check
          %p345 = pneg %p197
        $region46: #{tpu_custom_call.1} parent=39 // pred_check_branch
          %347 = sbr.rel (%p345) target = $region48
        $region47: #{tpu_custom_call.1} parent=39 // pred_region
          %p348 = scmp.lt.s32.totalorder %s25, 1
          %s349 = scalar_select %p348, %s25, 1
          %s350 = smul.addr %s349, 8
          %s351 = scalar_lea.vmem %s7, %s350
        $region48: #{tpu_custom_call.1} parent=39 // pred_fallthru
          _
      $region40: #{tpu_custom_call.1} parent=5 // pred_fallthru
        _
      %p352 = scmp.le.s32.totalorder 1, %s25
      %p353 = scmp.lt.s32.totalorder %s25, 3
      %p354 = pnand %p352, %p353
      %p355 = pneg %p354
      // Predicated region
      $region49: #{tpu_custom_call.1} parent=5 // pred_check
        _
      $region50: #{tpu_custom_call.1} parent=5 // pred_check_branch
        %357 = sbr.rel (%p354) target = $region52
      $region51: #{tpu_custom_call.1} parent=5 // pred_region
        %s358 = ssub.s32 %s25, 1
        // Predicated region
        $region53: #{tpu_custom_call.1} parent=51 // pred_check
          %p359 = pneg %p114
        $region54: #{tpu_custom_call.1} parent=51 // pred_check_branch
          %361 = sbr.rel (%p359) target = $region56
        $region55: #{tpu_custom_call.1} parent=51 // pred_region
          %362 = dma.done [#allocation3], 1024
        $region56: #{tpu_custom_call.1} parent=51 // pred_fallthru
          _
        // Predicated region
        $region57: #{tpu_custom_call.1} parent=51 // pred_check
          %p363 = pneg %p156
        $region58: #{tpu_custom_call.1} parent=51 // pred_check_branch
          %365 = sbr.rel (%p363) target = $region60
        $region59: #{tpu_custom_call.1} parent=51 // pred_region
          %366 = dma.done [#allocation6], 4096
        $region60: #{tpu_custom_call.1} parent=51 // pred_fallthru
          _
        %p367 = scmp.lt.s32.totalorder %s30, 1
        %s368 = scalar_select %p367, %s30, 1
        %s369 = smul.addr %s368, 8
        %s370 = scalar_lea.vmem %s0, %s369
        %p371 = pneg %p51
        %p372 = pneg %p48
        %p373 = pneg %p72
        %p374 = pneg %p69
        %p375 = pneg %p93
        %p376 = pneg %p90
        %p377 = pneg %p114
        %p378 = pneg %p111
        %p379 = pneg %p135
        %p380 = pneg %p132
        %p381 = pneg %p156
        %p382 = pneg %p153
        %p383 = pneg %p177
        %p384 = pneg %p174
        %p385 = scmp.lt.s32.totalorder %s30, 1
        %s386 = scalar_select %p385, %s30, 1
        %s387 = smul.addr %s386, 8
        %s388 = scalar_lea.vmem %s7, %s387
        %p389 = pneg %p203
        %p390 = pneg %p200
        %p391 = pneg %p229
        %p392 = pneg %p226
        %s393 = sand.u32 %s216, 1
        %s394 = scalar_lea.sflag [#allocation4], %s393
        %s395 = sand.u32 %s216, 1
        %s396 = smul.addr %s395, 8
        %s397 = scalar_lea.vmem [#allocation7], %s396
        %p398 = pneg %p255
        %p399 = pneg %p252
        %s400 = sand.u32 %s30, 1
        %s401 = scalar_lea.sflag [#allocation9], %s400
        %s402 = sand.u32 %s242, 1
        %s403 = smul.addr %s402, 8
        %s404 = scalar_lea.vmem [#allocation8], %s403
        %p405 = pneg %p281
        %p406 = pneg %p278
        %s407 = sand.u32 %s30, 1
        %s408 = scalar_lea.sflag [#allocation9], %s407
        %s409 = sand.u32 %s268, 1
        %s410 = smul.addr %s409, 8
        %s411 = scalar_lea.vmem [#allocation10], %s410
        %p412 = scmp.lt.s32.totalorder %s30, 1
        %s413 = scalar_select %p412, %s30, 1
        %s414 = smul.addr %s413, 8
        %s415 = scalar_lea.vmem %s0, %s414
        %p416 = scmp.lt.s32.totalorder %s30, 1
        %s417 = scalar_select %p416, %s30, 1
        %s418 = smul.addr %s417, 8
        %s419 = scalar_lea.vmem %s7, %s418
        %v420 = vld [vmem:[%s415] sm:$0xff]
        %v421 = vld [vmem:[%s1] sm:$0x7]
        %423 = vset.pattern.permute.xlu0 0
        %424 = vperm.xlu0 %423, %v420
        %v425 = vpop.permute.xlu0 %424
        %v427 = vlaneseq
        %v428 = vshrl.u32 %v427, 7
        %v429 = vsub.s32 0, %v428
        %v430 = vrot.slane %v421, %v429
        %v431 = vmul.f32 %v425, %v430
        %432 = vset.pattern.permute.xlu0 1
        %433 = vperm.xlu0 %432, %v420
        %v434 = vpop.permute.xlu0 %433
        %v436 = vlaneseq
        %v437 = vshrl.u32 %v436, 7
        %v438 = vsub.s32 1, %v437
        %v439 = vrot.slane %v421, %v438
        %v440 = vmul.f32 %v434, %v439
        %v441 = vadd.f32 %v431, %v440
        %442 = vset.pattern.permute.xlu0 2
        %443 = vperm.xlu0 %442, %v420
        %v444 = vpop.permute.xlu0 %443
        %v446 = vlaneseq
        %v447 = vshrl.u32 %v446, 7
        %v448 = vsub.s32 2, %v447
        %v449 = vrot.slane %v421, %v448
        %v450 = vmul.f32 %v444, %v449
        %v451 = vadd.f32 %v441, %v450
        %v452 = vld [vmem:[%s2] sm:$0x1]
        %v454 = vlaneseq
        %v455 = vshrl.u32 %v454, 7
        %v456 = vsub.s32 0, %v455
        %v457 = vrot.slane %v452, %v456
        %v459 = vadd.f32 %v451, %v457
        %v460 = vmax.f32 %v459, 0.0
        %v461 = vld [vmem:[#allocation2] sm:$0xff]
        %v462 = vld [vmem:[#allocation2 + $0x8] sm:$0xff]
        %v463 = vld [vmem:[#allocation2 + $0x10] sm:$0xff]
        %v464 = vld [vmem:[#allocation2 + $0x18] sm:$0xff]
        %v465 = vld [vmem:[#allocation2 + $0x20] sm:$0xff]
        %v466 = vld [vmem:[#allocation2 + $0x28] sm:$0xff]
        %v467 = vld [vmem:[#allocation2 + $0x30] sm:$0xff]
        %v468 = vld [vmem:[#allocation2 + $0x38] sm:$0xff]
        %v469 = vld [vmem:[%s4] sm:$0x1]
        %v471 = vlaneseq
        %v472 = vshrl.u32 %v471, 7
        %v473 = vsub.s32 0, %v472
        %v474 = vrot.slane %v469, %v473
        %vm476 = vcmask 523264
        %v478 = vsel %vm476, %v460, 0
        %480 = vmatprep.subr.mxu0 0.0
        %481 = vmatpush1.msra.mxu0 %v461
        %482 = vmatprep.subr.mxu0 0.0
        %483 = vmatpush1.msra.mxu0 %v462
        %484 = vmatprep.subr.mxu0 0.0
        %485 = vmatpush1.msra.mxu0 %v463
        %486 = vmatprep.subr.mxu0 0.0
        %487 = vmatpush1.msra.mxu0 %v464
        %488 = vmatprep.subr.mxu0 0.0
        %489 = vmatpush1.msra.mxu0 %v465
        %490 = vmatprep.subr.mxu0 0.0
        %491 = vmatpush1.msra.mxu0 %v466
        %492 = vmatprep.subr.mxu0 0.0
        %493 = vmatpush1.msra.mxu0 %v467
        %494 = vmatprep.subr.mxu0 0.0
        %495 = vmatpush1.msra.mxu0 %v468
        %496 = vmatprep.subr.mxu0 0.0
        %497 = vmatpush1.msra.mxu0 0.0
        %498 = vmatprep.subr.mxu0 0.0
        %499 = vmatpush1.msra.mxu0 0.0
        %500 = vmatprep.subr.mxu0 0.0
        %501 = vmatpush1.msra.mxu0 0.0
        %502 = vmatprep.subr.mxu0 0.0
        %503 = vmatpush1.msra.mxu0 0.0
        %504 = vmatprep.subr.mxu0 0.0
        %505 = vmatpush1.msra.mxu0 0.0
        %506 = vmatprep.subr.mxu0 0.0
        %507 = vmatpush1.msra.mxu0 0.0
        %508 = vmatprep.subr.mxu0 0.0
        %509 = vmatpush1.msra.mxu0 0.0
        %510 = vmatprep.subr.mxu0 0.0
        %511 = vmatpush1.msra.mxu0 0.0
        %512 = vmatprep.subr.mxu0 0.0
        %513 = vmatpush1.msra.mxu0 0.0
        %514 = vmatprep.subr.mxu0 0.0
        %515 = vmatpush1.msra.mxu0 0.0
        %516 = vmatprep.subr.mxu0 0.0
        %517 = vmatpush1.msra.mxu0 0.0
        %518 = vmatprep.subr.mxu0 0.0
        %519 = vmatpush1.msra.mxu0 0.0
        %520 = vmatprep.subr.mxu0 0.0
        %521 = vmatpush1.msra.mxu0 0.0
        %522 = vmatprep.subr.mxu0 0.0
        %523 = vmatpush1.msra.mxu0 0.0
        %524 = vmatprep.subr.mxu0 0.0
        %525 = vmatpush1.msra.mxu0 0.0
        %526 = vmatprep.subr.mxu0 0.0
        %527 = vmatpush1.msra.mxu0 0.0
        %528 = vmatprep.subr.mxu0 0.0
        %529 = vmatpush1.msra.mxu0 0.0
        %530 = vmatprep.subr.mxu0 0.0
        %531 = vmatpush1.msra.mxu0 0.0
        %532 = vmatprep.subr.mxu0 0.0
        %533 = vmatpush1.msra.mxu0 0.0
        %534 = vmatprep.subr.mxu0 0.0
        %535 = vmatpush1.msra.mxu0 0.0
        %536 = vmatprep.subr.mxu0 0.0
        %537 = vmatpush1.msra.mxu0 0.0
        %538 = vmatprep.subr.mxu0 0.0
        %539 = vmatpush1.msra.mxu0 0.0
        %540 = vmatprep.subr.mxu0 0.0
        %541 = vmatpush1.msra.mxu0 0.0
        %542 = vmatprep.subr.mxu0 0.0
        %543 = vmatpush1.msra.mxu0 0.0
        %544 = vmatprep.mubr.f32.mxu0 0.0
        %545 = vmatmul.mubr.f32.gmra.mrb[0].mxu0 %v478
        %v546 = vpop.f32.mrb[0].mxu0
        %v547 = vadd.f32 %v474, %v546
        %v548 = vpop.f32.mrb[0].mxu0
        %549 = vdwg.mxu0
        %v550 = vmax.f32 %v547, 0.0
        %v551 = vld [vmem:[#allocation5] sm:$0xff]
        %v552 = vld [vmem:[#allocation5 + $0x8] sm:$0xff]
        %v553 = vld [vmem:[#allocation5 + $0x10] sm:$0xff]
        %v554 = vld [vmem:[#allocation5 + $0x18] sm:$0xff]
        %v555 = vld [vmem:[#allocation5 + $0x20] sm:$0xff]
        %v556 = vld [vmem:[#allocation5 + $0x28] sm:$0xff]
        %v557 = vld [vmem:[#allocation5 + $0x30] sm:$0xff]
        %v558 = vld [vmem:[#allocation5 + $0x38] sm:$0xff]
        %v559 = vld [vmem:[#allocation5 + $0x40] sm:$0xff]
        %v560 = vld [vmem:[#allocation5 + $0x48] sm:$0xff]
        %v561 = vld [vmem:[#allocation5 + $0x50] sm:$0xff]
        %v562 = vld [vmem:[#allocation5 + $0x58] sm:$0xff]
        %v563 = vld [vmem:[#allocation5 + $0x60] sm:$0xff]
        %v564 = vld [vmem:[#allocation5 + $0x68] sm:$0xff]
        %v565 = vld [vmem:[#allocation5 + $0x70] sm:$0xff]
        %v566 = vld [vmem:[#allocation5 + $0x78] sm:$0xff]
        %v567 = vld [vmem:[#allocation5 + $0x80] sm:$0xff]
        %v568 = vld [vmem:[#allocation5 + $0x88] sm:$0xff]
        %v569 = vld [vmem:[#allocation5 + $0x90] sm:$0xff]
        %v570 = vld [vmem:[#allocation5 + $0x98] sm:$0xff]
        %v571 = vld [vmem:[#allocation5 + $0xa0] sm:$0xff]
        %v572 = vld [vmem:[#allocation5 + $0xa8] sm:$0xff]
        %v573 = vld [vmem:[#allocation5 + $0xb0] sm:$0xff]
        %v574 = vld [vmem:[#allocation5 + $0xb8] sm:$0xff]
        %v575 = vld [vmem:[#allocation5 + $0xc0] sm:$0xff]
        %v576 = vld [vmem:[#allocation5 + $0xc8] sm:$0xff]
        %v577 = vld [vmem:[#allocation5 + $0xd0] sm:$0xff]
        %v578 = vld [vmem:[#allocation5 + $0xd8] sm:$0xff]
        %v579 = vld [vmem:[#allocation5 + $0xe0] sm:$0xff]
        %v580 = vld [vmem:[#allocation5 + $0xe8] sm:$0xff]
        %v581 = vld [vmem:[#allocation5 + $0xf0] sm:$0xff]
        %v582 = vld [vmem:[#allocation5 + $0xf8] sm:$0xff]
        %v583 = vld [vmem:[%s6] sm:$0x3]
        %v585 = vlaneseq
        %v586 = vshrl.u32 %v585, 7
        %v587 = vsub.s32 0, %v586
        %v588 = vrot.slane %v583, %v587
        %v589 = vlaneseq
        %v590 = vshrl.u32 %v589, 7
        %v591 = vsub.s32 1, %v590
        %v592 = vrot.slane %v583, %v591
        %595 = vmatprep.subr.mxu0 %v552
        %596 = vmatpush1.msra.mxu0 %v551
        %597 = vmatprep.subr.mxu0 %v554
        %598 = vmatpush1.msra.mxu0 %v553
        %599 = vmatprep.subr.mxu0 %v556
        %600 = vmatpush1.msra.mxu0 %v555
        %601 = vmatprep.subr.mxu0 %v558
        %602 = vmatpush1.msra.mxu0 %v557
        %603 = vmatprep.subr.mxu0 %v560
        %604 = vmatpush1.msra.mxu0 %v559
        %605 = vmatprep.subr.mxu0 %v562
        %606 = vmatpush1.msra.mxu0 %v561
        %607 = vmatprep.subr.mxu0 %v564
        %608 = vmatpush1.msra.mxu0 %v563
        %609 = vmatprep.subr.mxu0 %v566
        %610 = vmatpush1.msra.mxu0 %v565
        %611 = vmatprep.subr.mxu0 %v568
        %612 = vmatpush1.msra.mxu0 %v567
        %613 = vmatprep.subr.mxu0 %v570
        %614 = vmatpush1.msra.mxu0 %v569
        %615 = vmatprep.subr.mxu0 %v572
        %616 = vmatpush1.msra.mxu0 %v571
        %617 = vmatprep.subr.mxu0 %v574
        %618 = vmatpush1.msra.mxu0 %v573
        %619 = vmatprep.subr.mxu0 %v576
        %620 = vmatpush1.msra.mxu0 %v575
        %621 = vmatprep.subr.mxu0 %v578
        %622 = vmatpush1.msra.mxu0 %v577
        %623 = vmatprep.subr.mxu0 %v580
        %624 = vmatpush1.msra.mxu0 %v579
        %625 = vmatprep.subr.mxu0 %v582
        %626 = vmatpush1.msra.mxu0 %v581
        %627 = vmatprep.subr.mxu0 0.0
        %628 = vmatpush1.msra.mxu0 0.0
        %629 = vmatprep.subr.mxu0 0.0
        %630 = vmatpush1.msra.mxu0 0.0
        %631 = vmatprep.subr.mxu0 0.0
        %632 = vmatpush1.msra.mxu0 0.0
        %633 = vmatprep.subr.mxu0 0.0
        %634 = vmatpush1.msra.mxu0 0.0
        %635 = vmatprep.subr.mxu0 0.0
        %636 = vmatpush1.msra.mxu0 0.0
        %637 = vmatprep.subr.mxu0 0.0
        %638 = vmatpush1.msra.mxu0 0.0
        %639 = vmatprep.subr.mxu0 0.0
        %640 = vmatpush1.msra.mxu0 0.0
        %641 = vmatprep.subr.mxu0 0.0
        %642 = vmatpush1.msra.mxu0 0.0
        %643 = vmatprep.subr.mxu0 0.0
        %644 = vmatpush1.msra.mxu0 0.0
        %645 = vmatprep.subr.mxu0 0.0
        %646 = vmatpush1.msra.mxu0 0.0
        %647 = vmatprep.subr.mxu0 0.0
        %648 = vmatpush1.msra.mxu0 0.0
        %649 = vmatprep.subr.mxu0 0.0
        %650 = vmatpush1.msra.mxu0 0.0
        %651 = vmatprep.subr.mxu0 0.0
        %652 = vmatpush1.msra.mxu0 0.0
        %653 = vmatprep.subr.mxu0 0.0
        %654 = vmatpush1.msra.mxu0 0.0
        %655 = vmatprep.subr.mxu0 0.0
        %656 = vmatpush1.msra.mxu0 0.0
        %657 = vmatprep.subr.mxu0 0.0
        %658 = vmatpush1.msra.mxu0 0.0
        %659 = vmatprep.mubr.f32.mxu0 0.0
        %660 = vmatmul.mubr.f32.gmra.mrb[0].mxu0 %v550
        %v661 = vpop.f32.mrb[0].mxu0
        %v662 = vadd.f32 %v588, %v661
        %v663 = vpop.f32.mrb[0].mxu0
        %v664 = vadd.f32 %v592, %v663
        %665 = vdwg.mxu0
        %v666 = vmul.f32 %v664, 0.5
        %v667 = vmul.f32 %v666, 1.442695
        %v668 = vpow.pop %v667
        %v669 = vld [vmem:[%s419] sm:$0xff]
        %v670 = vmul.f32 %v669, %v668
        %v671 = vadd.f32 %v662, %v670
        %672 = vst [vmem:[%s397] sm:$0xff] %v671
        %673 = vst [vmem:[%s404] sm:$0xff] %v662
        %674 = vst [vmem:[%s411] sm:$0xff] %v664
        %s675 = sand.u32 %s216, 1
        %s676 = scalar_lea.sflag [#allocation4], %s675
        %s677 = sand.u32 %s216, 1
        %s678 = smul.addr %s677, 8
        %s679 = scalar_lea.vmem [#allocation7], %s678
        %s680 = sand.u32 %s30, 1
        %s681 = scalar_lea.sflag [#allocation9], %s680
        %s682 = sand.u32 %s242, 1
        %s683 = smul.addr %s682, 8
        %s684 = scalar_lea.vmem [#allocation8], %s683
        %s685 = sand.u32 %s30, 1
        %s686 = scalar_lea.sflag [#allocation9], %s685
        %s687 = sand.u32 %s268, 1
        %s688 = smul.addr %s687, 8
        %s689 = scalar_lea.vmem [#allocation10], %s688
        // Predicated region
        $region61: #{tpu_custom_call.1} parent=51 // pred_check
          %p690 = pneg %p226
        $region62: #{tpu_custom_call.1} parent=51 // pred_check_branch
          %692 = sbr.rel (%p690) target = $region64
        $region63: #{tpu_custom_call.1} parent=51 // pred_region
          %s694 = ssub.s32 128, 128
          %695 = vsyncadd %s676, %s694
          %s696 = smul.addr %s30, 128
          %s697 = scalar_lea.hbm %s8, %s696
          %s699 = sshll.u32 %s679, 4
          %s700 = int_to_ptr.vmem [resolvable:$true] %s699
          %702 = dma.vmem_to_hbm [thread:$0]  %s700, 128, %s697, %s676
        $region64: #{tpu_custom_call.1} parent=51 // pred_fallthru
          _
        // Predicated region
        $region65: #{tpu_custom_call.1} parent=51 // pred_check
          %p703 = pneg %p252
        $region66: #{tpu_custom_call.1} parent=51 // pred_check_branch
          %705 = sbr.rel (%p703) target = $region68
        $region67: #{tpu_custom_call.1} parent=51 // pred_region
          %s707 = ssub.s32 128, 128
          %708 = vsyncadd %s681, %s707
          %s709 = smul.addr %s30, 128
          %s710 = scalar_lea.hbm %s9, %s709
          %s712 = sshll.u32 %s684, 4
          %s713 = int_to_ptr.vmem [resolvable:$true] %s712
          %715 = dma.vmem_to_hbm [thread:$0]  %s713, 128, %s710, %s681
        $region68: #{tpu_custom_call.1} parent=51 // pred_fallthru
          _
        // Predicated region
        $region69: #{tpu_custom_call.1} parent=51 // pred_check
          %p716 = pneg %p278
        $region70: #{tpu_custom_call.1} parent=51 // pred_check_branch
          %718 = sbr.rel (%p716) target = $region72
        $region71: #{tpu_custom_call.1} parent=51 // pred_region
          %s720 = ssub.s32 128, 128
          %721 = vsyncadd %s686, %s720
          %s722 = smul.addr %s30, 128
          %s723 = scalar_lea.hbm %s10, %s722
          %s725 = sshll.u32 %s689, 4
          %s726 = int_to_ptr.vmem [resolvable:$true] %s725
          %728 = dma.vmem_to_hbm [thread:$0]  %s726, 128, %s723, %s686
        $region72: #{tpu_custom_call.1} parent=51 // pred_fallthru
          _
      $region52: #{tpu_custom_call.1} parent=5 // pred_fallthru
        _
      %p729 = scmp.le.s32.totalorder 2, %s25
      // Predicated region
      $region73: #{tpu_custom_call.1} parent=5 // pred_check
        %p730 = pneg %p729
      $region74: #{tpu_custom_call.1} parent=5 // pred_check_branch
        %732 = sbr.rel (%p730) target = $region76
      $region75: #{tpu_custom_call.1} parent=5 // pred_region
        %s733 = ssub.s32 %s25, 2
        // Predicated region
        $region77: #{tpu_custom_call.1} parent=75 // pred_check
          %p734 = pneg %p232
        $region78: #{tpu_custom_call.1} parent=75 // pred_check_branch
          %736 = sbr.rel (%p734) target = $region80
        $region79: #{tpu_custom_call.1} parent=75 // pred_region
          %s737 = sand.u32 %s217, 1
          %s738 = scalar_lea.sflag [#allocation4], %s737
          %s739 = sand.u32 %s217, 1
          %s740 = smul.addr %s739, 8
          %s741 = scalar_lea.vmem [#allocation7], %s740
          %742 = dma.done %s738, 128
        $region80: #{tpu_custom_call.1} parent=75 // pred_fallthru
          _
        // Predicated region
        $region81: #{tpu_custom_call.1} parent=75 // pred_check
          %p743 = pneg %p258
        $region82: #{tpu_custom_call.1} parent=75 // pred_check_branch
          %745 = sbr.rel (%p743) target = $region84
        $region83: #{tpu_custom_call.1} parent=75 // pred_region
          %s746 = sand.u32 %s31, 1
          %s747 = scalar_lea.sflag [#allocation9], %s746
          %s748 = sand.u32 %s243, 1
          %s749 = smul.addr %s748, 8
          %s750 = scalar_lea.vmem [#allocation8], %s749
          %751 = dma.done %s747, 128
        $region84: #{tpu_custom_call.1} parent=75 // pred_fallthru
          _
        // Predicated region
        $region85: #{tpu_custom_call.1} parent=75 // pred_check
          %p752 = pneg %p284
        $region86: #{tpu_custom_call.1} parent=75 // pred_check_branch
          %754 = sbr.rel (%p752) target = $region88
        $region87: #{tpu_custom_call.1} parent=75 // pred_region
          %s755 = sand.u32 %s31, 1
          %s756 = scalar_lea.sflag [#allocation9], %s755
          %s757 = sand.u32 %s269, 1
          %s758 = smul.addr %s757, 8
          %s759 = scalar_lea.vmem [#allocation10], %s758
          %760 = dma.done %s756, 128
        $region88: #{tpu_custom_call.1} parent=75 // pred_fallthru
          _
      $region76: #{tpu_custom_call.1} parent=5 // pred_fallthru
        _
    $region6: #{tpu_custom_call.1} parent=1 // loop_footer
      %s29 = sadd.s32 1, %s25
    $region7: #{tpu_custom_call.1} parent=1 // loop_footer_branch
      %24 = sbr.rel target = $region3
    $region8: #{tpu_custom_call.1} parent=1 // loop_exit
      _
    %761 = vsyncpa [#allocation3], 1
    %s762 = scalar_lea.sflag [#allocation3], 1
    %763 = vsyncpa %s762, 1
    %764 = vsyncpa [#allocation6], 1
    %765 = vsyncpa [#allocation4], 1
    %s766 = scalar_lea.sflag [#allocation4], 1
    %767 = vsyncpa %s766, 1
    %768 = vsyncpa [#allocation9], 1
    %s769 = scalar_lea.sflag [#allocation9], 1
    %770 = vsyncpa %s769, 1

</llo_original>
